<compile_context>
chip_gen: v7x
topology: tpu7x:2x2x1
jax: 0.10.0
libtpu: 0.0.40
codegen_flags: <defaults>
</compile_context>

<pallas_src>
import jax
import jax.numpy as jnp
from jax.experimental import pallas as pl
from jax.experimental.pallas import tpu as pltpu


def _pad8(n):
    return -(-n // 8) * 8


def _fuse_and_pack(t_params, s_params, mask, D, H):
    """Fuse translate/scale nets into one 2H-wide chain and pack into one f32 buffer.

    The binary coupling mask is folded into the layer-0 weights and (1 - mask) is
    stored as an extra row of the packed buffer, so the kernel only needs x + packed.

    Returns (packed (R, 2H) f32, layer_descs, o_onem) where layer_descs is a tuple of
    (w_row_offset, w_rows, b_row_offset) per linear layer; every segment is padded to
    a multiple of 8 rows so all in-kernel slices are sublane aligned.
    """
    H2, D2 = 2 * H, 2 * D
    f32 = lambda a: jnp.asarray(a, jnp.float32)
    mask = f32(mask).reshape(D)

    def blockdiag(a, b):
        ra, ca = a.shape
        rb, cb = b.shape
        out = jnp.zeros((ra + rb, ca + cb), jnp.float32)
        return out.at[:ra, :ca].set(a).at[ra:, ca:].set(b)

    n_layers = len(t_params)
    # layer 0: same (masked) input -> concat along output dim; fold mask into rows
    ws = [mask[:, None]
          * jnp.concatenate([f32(t_params[0][0]), f32(s_params[0][0])], axis=1)]  # (D, 2H)
    bs = [jnp.concatenate([f32(t_params[0][1]), f32(s_params[0][1])])]            # (2H,)
    # layers 1..: independent halves -> block diagonal
    for li in range(1, n_layers):
        ws.append(blockdiag(f32(t_params[li][0]), f32(s_params[li][0])))
        bs.append(jnp.concatenate([f32(t_params[li][1]), f32(s_params[li][1])]))
    # final layer outputs 2D cols; zero-pad to 2H lanes for a uniform buffer width
    ws[-1] = jnp.pad(ws[-1], ((0, 0), (0, H2 - D2)))
    bs[-1] = jnp.pad(bs[-1], (0, H2 - D2))

    segments, offsets = [], []
    row = 0

    def push(seg):
        nonlocal row
        offsets.append(row)
        rows = seg.shape[0]
        pr = _pad8(rows)
        if pr != rows:
            seg = jnp.pad(seg, ((0, pr - rows), (0, 0)))
        segments.append(seg)
        row += pr

    layer_descs = []
    for w, b in zip(ws, bs):
        push(w)
        o_w = offsets[-1]
        push(b.reshape(1, -1))
        o_b = offsets[-1]
        layer_descs.append((o_w, w.shape[0], o_b))

    push(jnp.pad(1.0 - mask, (0, H2 - D)).reshape(1, H2))   # precomputed (1 - mask) row
    o_onem = offsets[-1]

    packed = jnp.concatenate(segments, axis=0)   # (R, 2H), R multiple of 8
    return packed, tuple(layer_descs), o_onem


def _make_coupling_kernel(D, H, block_b, layer_descs, o_onem):
    H2 = 2 * H

    def kernel(x_ref, p_ref, o_ref):
        x = x_ref[...]                                   # (block_b, D) f32

        # lanes [0, H) = translate half (ReLU); lanes [H, 2H) = scale half (tanh)
        is_scale_half = jax.lax.broadcasted_iota(jnp.int32, (block_b, H2), 1) >= H

        def act(h):
            return jnp.where(is_scale_half, jnp.tanh(h), jnp.maximum(h, 0.0))

        def lin(h, desc):
            o_w, k_rows, o_b = desc
            w = p_ref[pl.ds(o_w, k_rows), :]             # static slice of packed buffer
            b = p_ref[pl.ds(o_b, 1), :]
            return jnp.dot(h, w, preferred_element_type=jnp.float32) + b

        # Layer 0: K = D is tiny, so skip the MXU round-trip and do unrolled VPU
        # broadcast-FMAs (the matmul chain is serial; this shortens the latency path).
        o_w0, k0, o_b0 = layer_descs[0]
        if k0 <= 16:
            h = p_ref[pl.ds(o_b0, 1), :]                 # (1, 2H) bias row
            for j in range(k0):                          # mask already folded into w0
                h = h + x[:, j:j + 1] * p_ref[pl.ds(o_w0 + j, 1), :]
        else:
            h = lin(x, layer_descs[0])
        h = act(h)

        for desc in layer_descs[1:-1]:
            h = act(lin(h, desc))
        out = lin(h, layer_descs[-1])                    # (block_b, 2H); first 2D cols real

        one_minus_mask = p_ref[pl.ds(o_onem, 1), :][:, :D]     # (1, D)
        t = out[:, :D] * one_minus_mask
        log_s = out[:, D:2 * D] * one_minus_mask

        # merged output slab: y in lanes [0, D), logdet in lane D -> one writeback DMA
        o_ref[:, :D] = x * jnp.exp(log_s) + t
        o_ref[:, D:D + 1] = jnp.sum(log_s, axis=-1, keepdims=True)

    return kernel


def _choose_block_b(B):
    bp8 = _pad8(B)
    if bp8 <= 256:
        return bp8               # tiny batch: single tile; overhead-bound regardless
    # >= 2 balanced grid steps (keeps both v7x TensorCores busy), each <= 1024 rows,
    # which also keeps per-step overhead amortized on single-TC v5e/v6e.
    n_steps = max(2, pl.cdiv(bp8, 1024))
    return _pad8(pl.cdiv(bp8, n_steps))


def coupling_layer_direct(x, mask, t_params, s_params, *, block_b=None):
    """x: (B, D) f32; mask: (D,) f32; *_params: (w[in,out], b[out]) pairs per net.

    Returns (y (B, D), logdet (B, 1)) matching CouplingLayer.forward(mode='direct').
    """
    # TODO(synk): mode='inverse', cond_inputs, and translate_only paths not wired up.
    # TODO(synk): a full RealNVP stack should fuse all coupling layers into one
    #             pallas_call (same body looped in-kernel, all weights resident in VMEM).
    B, D = x.shape
    H = t_params[0][0].shape[1]
    packed, layer_descs, o_onem = _fuse_and_pack(t_params, s_params, mask, D, H)

    if block_b is None:
        block_b = _choose_block_b(B)
    Bp = pl.cdiv(B, block_b) * block_b
    x_in = x.astype(jnp.float32)
    if Bp != B:
        x_in = jnp.pad(x_in, ((0, Bp - B), (0, 0)))

    kernel = _make_coupling_kernel(D, H, block_b, layer_descs, o_onem)

    out = pl.pallas_call(
        kernel,
        grid=(Bp // block_b,),
        in_specs=[
            pl.BlockSpec((block_b, D), lambda i: (i, 0)),   # batch-tiled activations
            pl.BlockSpec(packed.shape, lambda i: (0, 0)),   # all weights: 1 DMA, resident
        ],
        out_specs=pl.BlockSpec((block_b, D + 1), lambda i: (i, 0)),
        out_shape=jax.ShapeDtypeStruct((Bp, D + 1), jnp.float32),
        compiler_params=pltpu.CompilerParams(
            dimension_semantics=("parallel",)),             # megacore batch split on v7x
    )(x_in, packed)

    return out[:B, :D], out[:B, D:D + 1]


def _ref_forward(x, mask, t_params, s_params):
    """Pure-JAX reference mirroring the PyTorch module (mode='direct')."""
    def mlp(h, params, act):
        for i, (w, b) in enumerate(params):
            h = h @ w + b
            if i < len(params) - 1:
                h = act(h)
        return h
    masked = x * mask
    t = mlp(masked, t_params, lambda v: jnp.maximum(v, 0.0)) * (1.0 - mask)
    log_s = mlp(masked, s_params, jnp.tanh) * (1.0 - mask)
    return x * jnp.exp(log_s) + t, jnp.sum(log_s, -1, keepdims=True)


def _init_net(key, dims, scale=0.2):
    """Deterministic synthetic init: list of (w[in,out], b[out]) pairs."""
    params = []
    for din, dout in zip(dims[:-1], dims[1:]):
        key, kw = jax.random.split(key)
        w = scale * jax.random.normal(kw, (din, dout), jnp.float32)
        b = jnp.zeros((dout,), jnp.float32)
        params.append((w, b))
    return key, params


if __name__ == "__main__":
    # Module hyperparams: num_inputs=4, num_hidden=32, num_layers=2, no cond inputs.
    B, D, H = 8, 4, 32
    dims = [D, H, H, H, D]  # Linear(D,H), Linear(H,H), Linear(H,H), Linear(H,D)

    key = jax.random.PRNGKey(0)
    key, t_params = _init_net(key, dims)   # translate_net (ReLU)
    key, s_params = _init_net(key, dims)   # scale_net (tanh)

    key, kx = jax.random.split(key)
    x = jax.random.normal(kx, (B, D), jnp.float32)
    mask = jnp.array([1.0, 0.0, 1.0, 0.0], jnp.float32)  # alternating RealNVP mask

    y, logdet = coupling_layer_direct(x, mask, t_params, s_params)
    y = jax.block_until_ready(y)
    logdet = jax.block_until_ready(logdet)

    y_ref, ld_ref = _ref_forward(x, mask, t_params, s_params)
    assert y.shape == (B, D) and logdet.shape == (B, 1)
    assert jnp.allclose(y, y_ref, atol=1e-5, rtol=1e-5), "output mismatch"
    assert jnp.allclose(logdet, ld_ref, atol=1e-5, rtol=1e-5), "logdet mismatch"

    print("KERNEL_OK")
</pallas_src>

<mosaic_0001>
module attributes {stable_mosaic.version = 11 : i64} {
  func.func @kernel(%arg0: i32, %arg1: memref<8x4xf32, #tpu.memory_space<vmem>>, %arg2: memref<240x64xf32, #tpu.memory_space<vmem>>, %arg3: memref<8x5xf32, #tpu.memory_space<vmem>>) attributes {dimension_semantics = [#tpu.dimension_semantics<parallel>], iteration_bounds = array<i64: 1>, scalar_prefetch = 0 : i64, scratch_operands = 0 : i64, tpu.core_type = #tpu.core_type<tc>, window_params = [{transform_indices = @transform_0, window_bounds = array<i64: 8, 4>}, {pipeline_mode = #tpu.pipeline_mode<synchronous>, transform_indices = @transform_1, window_bounds = array<i64: 240, 64>}, {transform_indices = @transform_2, window_bounds = array<i64: 8, 5>}]} {
    %c0 = arith.constant 0 : index
    %c0_0 = arith.constant 0 : index
    %0 = vector.load %arg1[%c0, %c0_0] : memref<8x4xf32, #tpu.memory_space<vmem>>, vector<8x4xf32>
    %1 = tpu.iota {dimensions = array<i32: 1>} : vector<8x64xi32>
    %c32_i32 = arith.constant 32 : i32
    %2 = vector.broadcast %c32_i32 : i32 to vector<8x64xi32>
    %3 = arith.cmpi sge, %1, %2 : vector<8x64xi32>
    %c8 = arith.constant 8 : index
    %c0_1 = arith.constant 0 : index
    %4 = vector.load %arg2[%c8, %c0_1] : memref<240x64xf32, #tpu.memory_space<vmem>>, vector<1x64xf32>
    %5 = vector.extract_strided_slice %0 {offsets = [0, 0], sizes = [8, 1], strides = [1, 1]} : vector<8x4xf32> to vector<8x1xf32>
    %c0_2 = arith.constant 0 : index
    %c0_3 = arith.constant 0 : index
    %6 = vector.load %arg2[%c0_2, %c0_3] : memref<240x64xf32, #tpu.memory_space<vmem>>, vector<1x64xf32>
    %7 = vector.broadcast %5 : vector<8x1xf32> to vector<8x64xf32>
    %8 = vector.broadcast %6 : vector<1x64xf32> to vector<8x64xf32>
    %9 = arith.mulf %7, %8 : vector<8x64xf32>
    %10 = vector.broadcast %4 : vector<1x64xf32> to vector<8x64xf32>
    %11 = arith.addf %10, %9 : vector<8x64xf32>
    %12 = vector.extract_strided_slice %0 {offsets = [0, 1], sizes = [8, 1], strides = [1, 1]} : vector<8x4xf32> to vector<8x1xf32>
    %c1 = arith.constant 1 : index
    %c0_4 = arith.constant 0 : index
    %13 = vector.load %arg2[%c1, %c0_4] : memref<240x64xf32, #tpu.memory_space<vmem>>, vector<1x64xf32>
    %14 = vector.broadcast %12 : vector<8x1xf32> to vector<8x64xf32>
    %15 = vector.broadcast %13 : vector<1x64xf32> to vector<8x64xf32>
    %16 = arith.mulf %14, %15 : vector<8x64xf32>
    %17 = arith.addf %11, %16 : vector<8x64xf32>
    %18 = vector.extract_strided_slice %0 {offsets = [0, 2], sizes = [8, 1], strides = [1, 1]} : vector<8x4xf32> to vector<8x1xf32>
    %c2 = arith.constant 2 : index
    %c0_5 = arith.constant 0 : index
    %19 = vector.load %arg2[%c2, %c0_5] : memref<240x64xf32, #tpu.memory_space<vmem>>, vector<1x64xf32>
    %20 = vector.broadcast %18 : vector<8x1xf32> to vector<8x64xf32>
    %21 = vector.broadcast %19 : vector<1x64xf32> to vector<8x64xf32>
    %22 = arith.mulf %20, %21 : vector<8x64xf32>
    %23 = arith.addf %17, %22 : vector<8x64xf32>
    %24 = vector.extract_strided_slice %0 {offsets = [0, 3], sizes = [8, 1], strides = [1, 1]} : vector<8x4xf32> to vector<8x1xf32>
    %c3 = arith.constant 3 : index
    %c0_6 = arith.constant 0 : index
    %25 = vector.load %arg2[%c3, %c0_6] : memref<240x64xf32, #tpu.memory_space<vmem>>, vector<1x64xf32>
    %26 = vector.broadcast %24 : vector<8x1xf32> to vector<8x64xf32>
    %27 = vector.broadcast %25 : vector<1x64xf32> to vector<8x64xf32>
    %28 = arith.mulf %26, %27 : vector<8x64xf32>
    %29 = arith.addf %23, %28 : vector<8x64xf32>
    %30 = math.tanh %29 : vector<8x64xf32>
    %cst = arith.constant 0.000000e+00 : f32
    %31 = vector.broadcast %cst : f32 to vector<8x64xf32>
    %32 = arith.maximumf %29, %31 : vector<8x64xf32>
    %33 = arith.select %3, %30, %32 : vector<8x64xi1>, vector<8x64xf32>
    %c16 = arith.constant 16 : index
    %c0_7 = arith.constant 0 : index
    %34 = vector.load %arg2[%c16, %c0_7] : memref<240x64xf32, #tpu.memory_space<vmem>>, vector<64x64xf32>
    %c80 = arith.constant 80 : index
    %c0_8 = arith.constant 0 : index
    %35 = vector.load %arg2[%c80, %c0_8] : memref<240x64xf32, #tpu.memory_space<vmem>>, vector<1x64xf32>
    %cst_9 = arith.constant dense<0.000000e+00> : vector<8x64xf32>
    %36 = tpu.matmul %33, %34, %cst_9 {dimension_numbers = #tpu.dot_dimension_numbers<[1], [0], [0], [1], [0, 0, 1, 1], [], []>} : vector<8x64xf32>, vector<64x64xf32>, vector<8x64xf32> -> vector<8x64xf32>
    %37 = vector.broadcast %35 : vector<1x64xf32> to vector<8x64xf32>
    %38 = arith.addf %36, %37 : vector<8x64xf32>
    %39 = math.tanh %38 : vector<8x64xf32>
    %cst_10 = arith.constant 0.000000e+00 : f32
    %40 = vector.broadcast %cst_10 : f32 to vector<8x64xf32>
    %41 = arith.maximumf %38, %40 : vector<8x64xf32>
    %42 = arith.select %3, %39, %41 : vector<8x64xi1>, vector<8x64xf32>
    %c88 = arith.constant 88 : index
    %c0_11 = arith.constant 0 : index
    %43 = vector.load %arg2[%c88, %c0_11] : memref<240x64xf32, #tpu.memory_space<vmem>>, vector<64x64xf32>
    %c152 = arith.constant 152 : index
    %c0_12 = arith.constant 0 : index
    %44 = vector.load %arg2[%c152, %c0_12] : memref<240x64xf32, #tpu.memory_space<vmem>>, vector<1x64xf32>
    %cst_13 = arith.constant dense<0.000000e+00> : vector<8x64xf32>
    %45 = tpu.matmul %42, %43, %cst_13 {dimension_numbers = #tpu.dot_dimension_numbers<[1], [0], [0], [1], [0, 0, 1, 1], [], []>} : vector<8x64xf32>, vector<64x64xf32>, vector<8x64xf32> -> vector<8x64xf32>
    %46 = vector.broadcast %44 : vector<1x64xf32> to vector<8x64xf32>
    %47 = arith.addf %45, %46 : vector<8x64xf32>
    %48 = math.tanh %47 : vector<8x64xf32>
    %cst_14 = arith.constant 0.000000e+00 : f32
    %49 = vector.broadcast %cst_14 : f32 to vector<8x64xf32>
    %50 = arith.maximumf %47, %49 : vector<8x64xf32>
    %51 = arith.select %3, %48, %50 : vector<8x64xi1>, vector<8x64xf32>
    %c160 = arith.constant 160 : index
    %c0_15 = arith.constant 0 : index
    %52 = vector.load %arg2[%c160, %c0_15] : memref<240x64xf32, #tpu.memory_space<vmem>>, vector<64x64xf32>
    %c224 = arith.constant 224 : index
    %c0_16 = arith.constant 0 : index
    %53 = vector.load %arg2[%c224, %c0_16] : memref<240x64xf32, #tpu.memory_space<vmem>>, vector<1x64xf32>
    %cst_17 = arith.constant dense<0.000000e+00> : vector<8x64xf32>
    %54 = tpu.matmul %51, %52, %cst_17 {dimension_numbers = #tpu.dot_dimension_numbers<[1], [0], [0], [1], [0, 0, 1, 1], [], []>} : vector<8x64xf32>, vector<64x64xf32>, vector<8x64xf32> -> vector<8x64xf32>
    %55 = vector.broadcast %53 : vector<1x64xf32> to vector<8x64xf32>
    %56 = arith.addf %54, %55 : vector<8x64xf32>
    %c232 = arith.constant 232 : index
    %c0_18 = arith.constant 0 : index
    %57 = vector.load %arg2[%c232, %c0_18] : memref<240x64xf32, #tpu.memory_space<vmem>>, vector<1x64xf32>
    %58 = vector.extract_strided_slice %57 {offsets = [0, 0], sizes = [1, 4], strides = [1, 1]} : vector<1x64xf32> to vector<1x4xf32>
    %59 = vector.extract_strided_slice %56 {offsets = [0, 0], sizes = [8, 4], strides = [1, 1]} : vector<8x64xf32> to vector<8x4xf32>
    %60 = vector.broadcast %58 : vector<1x4xf32> to vector<8x4xf32>
    %61 = arith.mulf %59, %60 : vector<8x4xf32>
    %62 = vector.extract_strided_slice %56 {offsets = [0, 4], sizes = [8, 4], strides = [1, 1]} : vector<8x64xf32> to vector<8x4xf32>
    %63 = vector.broadcast %58 : vector<1x4xf32> to vector<8x4xf32>
    %64 = arith.mulf %62, %63 : vector<8x4xf32>
    %65 = math.exp %64 : vector<8x4xf32>
    %66 = arith.mulf %0, %65 : vector<8x4xf32>
    %67 = arith.addf %66, %61 : vector<8x4xf32>
    %c0_19 = arith.constant 0 : index
    %c0_20 = arith.constant 0 : index
    %68 = vector.load %arg3[%c0_19, %c0_20] : memref<8x5xf32, #tpu.memory_space<vmem>>, vector<8x4xf32>
    tpu.vector_store %arg3[%c0_19, %c0_20], %67 {strides = array<i32>} : memref<8x5xf32, #tpu.memory_space<vmem>>, vector<8x4xf32>,
    %cst_21 = arith.constant dense<0.000000e+00> : vector<8xf32>
    %69 = vector.multi_reduction <add>, %64, %cst_21 [1] : vector<8x4xf32> to vector<8xf32>
    %70 = vector.shape_cast %69 : vector<8xf32> to vector<8x1xf32>
    %c0_22 = arith.constant 0 : index
    %c4 = arith.constant 4 : index
    %71 = vector.load %arg3[%c0_22, %c4] : memref<8x5xf32, #tpu.memory_space<vmem>>, vector<8x1xf32>
    tpu.vector_store %arg3[%c0_22, %c4], %70 {strides = array<i32>} : memref<8x5xf32, #tpu.memory_space<vmem>>, vector<8x1xf32>,
    return
  }
  func.func @transform_0(%arg0: i32) -> (i32, i32) {
    %c0_i32 = arith.constant 0 : i32
    %c0_i32_0 = arith.constant 0 : i32
    return %arg0, %c0_i32 : i32, i32
  }
  func.func @transform_1(%arg0: i32) -> (i32, i32) {
    %c0_i32 = arith.constant 0 : i32
    %c0_i32_0 = arith.constant 0 : i32
    %c0_i32_1 = arith.constant 0 : i32
    return %c0_i32, %c0_i32_0 : i32, i32
  }
  func.func @transform_2(%arg0: i32) -> (i32, i32) {
    %c0_i32 = arith.constant 0 : i32
    %c0_i32_0 = arith.constant 0 : i32
    return %arg0, %c0_i32 : i32, i32
  }
}

</mosaic_0001>

<llo_original>
// kernel: tpu_custom_call.1
$region0: #{tpu_custom_call.1}
  #allocation0 [shape = 'u32[]', space=smem, size = 0x4, offset = 0x4, fixed_abs, tag = 'smem constant byte address 0x4 - core index']
  #allocation1 [shape = 'u32[144,128]{1,0:T(1,128)}', space=vmem, size = 0x12000, scoped, tag = 'internal scratch']
  %s0 = inlined_call_operand.vmem [shape: f32[8,4], index: 0, kind: input, shape index: {}]
  %s1 = inlined_call_operand.vmem [shape: f32[240,64], index: 1, kind: input, shape index: {}]
  %s2 = inlined_call_operand.hbm [shape: f32[8,5], index: 2, kind: output, shape index: {}]
  %s3 = sld [smem:[#allocation0]]
  $region18: #{tpu_custom_call.1} parent=0
    _
  %s5 = ssub.s32 1, %s3
  %s6 = scalar_select 0, %s5, %s3
  $region1: #{tpu_custom_call.1} parent=0
    #allocation2 [shape = 'u8[4096]{0}', space=vmem, size = 0x1000, scoped, tag = 'output window, operand 0, single buffered']
    #allocation3 [shape = 's32[1]{0}', space=sflag, size = 0x4, scoped, tag = 'scoped memory for tpu_custom_call.1']
    %7 = vsyncpa [#allocation3], 0
    // Predicated region
    $region2: #{tpu_custom_call.1} parent=1 // pred_check
      _
    $region3: #{tpu_custom_call.1} parent=1 // pred_check_branch
      %9 = sbr.rel (0) target = $region5
    $region4: #{tpu_custom_call.1} parent=1 // pred_region
      _
    $region5: #{tpu_custom_call.1} parent=1 // pred_fallthru
      _
    // Predicated region
    $region6: #{tpu_custom_call.1} parent=1 // pred_check
      _
    $region7: #{tpu_custom_call.1} parent=1 // pred_check_branch
      %11 = sbr.rel (0) target = $region9
    $region8: #{tpu_custom_call.1} parent=1 // pred_region
      _
    $region9: #{tpu_custom_call.1} parent=1 // pred_fallthru
      _
    %v12 = vld [vmem:[%s0] sm:$0xff]
    %v13 = vlaneseq
    %v14 = vand.u32 %v13, 127
    %vm15 = vcmp.ge.s32.totalorder %v14, 32
    %v16 = vld [vmem:[%s1 + $0x8] sm:$0x1]
    %v17 = vld [vmem:[%s1] sm:$0x1]
    %19 = vset.pattern.permute.xlu0 0
    %20 = vperm.xlu0 %19, %v12
    %v21 = vpop.permute.xlu0 %20
    %v23 = vlaneseq
    %v24 = vshrl.u32 %v23, 7
    %v25 = vsub.s32 0, %v24
    %v26 = vrot.slane %v17, %v25
    %v27 = vmul.f32 %v21, %v26
    %v28 = vlaneseq
    %v29 = vshrl.u32 %v28, 7
    %v30 = vsub.s32 0, %v29
    %v31 = vrot.slane %v16, %v30
    %v32 = vadd.f32 %v31, %v27
    %v33 = vld [vmem:[%s1 + $0x1] sm:$0x1]
    %34 = vset.pattern.permute.xlu0 1
    %35 = vperm.xlu0 %34, %v12
    %v36 = vpop.permute.xlu0 %35
    %v38 = vlaneseq
    %v39 = vshrl.u32 %v38, 7
    %v40 = vsub.s32 0, %v39
    %v41 = vrot.slane %v33, %v40
    %v42 = vmul.f32 %v36, %v41
    %v43 = vadd.f32 %v32, %v42
    %v44 = vld [vmem:[%s1 + $0x2] sm:$0x1]
    %45 = vset.pattern.permute.xlu0 2
    %46 = vperm.xlu0 %45, %v12
    %v47 = vpop.permute.xlu0 %46
    %v49 = vlaneseq
    %v50 = vshrl.u32 %v49, 7
    %v51 = vsub.s32 0, %v50
    %v52 = vrot.slane %v44, %v51
    %v53 = vmul.f32 %v47, %v52
    %v54 = vadd.f32 %v43, %v53
    %v55 = vld [vmem:[%s1 + $0x3] sm:$0x1]
    %56 = vset.pattern.permute.xlu0 3
    %57 = vperm.xlu0 %56, %v12
    %v58 = vpop.permute.xlu0 %57
    %v60 = vlaneseq
    %v61 = vshrl.u32 %v60, 7
    %v62 = vsub.s32 0, %v61
    %v63 = vrot.slane %v55, %v62
    %v64 = vmul.f32 %v58, %v63
    %v65 = vadd.f32 %v54, %v64
    %v66 = vtanh.pop %v65
    %v67 = vmax.f32 %v65, 0.0
    %v68 = vsel %vm15, %v66, %v67
    %v69 = vld [vmem:[%s1 + $0x10] sm:$0xff]
    %v70 = vld [vmem:[%s1 + $0x18] sm:$0xff]
    %v71 = vld [vmem:[%s1 + $0x20] sm:$0xff]
    %v72 = vld [vmem:[%s1 + $0x28] sm:$0xff]
    %v73 = vld [vmem:[%s1 + $0x30] sm:$0xff]
    %v74 = vld [vmem:[%s1 + $0x38] sm:$0xff]
    %v75 = vld [vmem:[%s1 + $0x40] sm:$0xff]
    %v76 = vld [vmem:[%s1 + $0x48] sm:$0xff]
    %v77 = vld [vmem:[%s1 + $0x50] sm:$0x1]
    %v78 = vlaneseq
    %v79 = vshrl.u32 %v78, 7
    %v80 = vsub.s32 0, %v79
    %v81 = vrot.slane %v77, %v80
    %vm82 = vcmask 523264
    %v84 = vsel %vm82, %v68, 0
    %86 = vmatprep.subr.mxu0 0.0
    %87 = vmatpush1.msra.mxu0 %v69
    %88 = vmatprep.subr.mxu0 0.0
    %89 = vmatpush1.msra.mxu0 %v70
    %90 = vmatprep.subr.mxu0 0.0
    %91 = vmatpush1.msra.mxu0 %v71
    %92 = vmatprep.subr.mxu0 0.0
    %93 = vmatpush1.msra.mxu0 %v72
    %94 = vmatprep.subr.mxu0 0.0
    %95 = vmatpush1.msra.mxu0 %v73
    %96 = vmatprep.subr.mxu0 0.0
    %97 = vmatpush1.msra.mxu0 %v74
    %98 = vmatprep.subr.mxu0 0.0
    %99 = vmatpush1.msra.mxu0 %v75
    %100 = vmatprep.subr.mxu0 0.0
    %101 = vmatpush1.msra.mxu0 %v76
    %102 = vmatprep.subr.mxu0 0.0
    %103 = vmatpush1.msra.mxu0 0.0
    %104 = vmatprep.subr.mxu0 0.0
    %105 = vmatpush1.msra.mxu0 0.0
    %106 = vmatprep.subr.mxu0 0.0
    %107 = vmatpush1.msra.mxu0 0.0
    %108 = vmatprep.subr.mxu0 0.0
    %109 = vmatpush1.msra.mxu0 0.0
    %110 = vmatprep.subr.mxu0 0.0
    %111 = vmatpush1.msra.mxu0 0.0
    %112 = vmatprep.subr.mxu0 0.0
    %113 = vmatpush1.msra.mxu0 0.0
    %114 = vmatprep.subr.mxu0 0.0
    %115 = vmatpush1.msra.mxu0 0.0
    %116 = vmatprep.subr.mxu0 0.0
    %117 = vmatpush1.msra.mxu0 0.0
    %118 = vmatprep.subr.mxu0 0.0
    %119 = vmatpush1.msra.mxu0 0.0
    %120 = vmatprep.subr.mxu0 0.0
    %121 = vmatpush1.msra.mxu0 0.0
    %122 = vmatprep.subr.mxu0 0.0
    %123 = vmatpush1.msra.mxu0 0.0
    %124 = vmatprep.subr.mxu0 0.0
    %125 = vmatpush1.msra.mxu0 0.0
    %126 = vmatprep.subr.mxu0 0.0
    %127 = vmatpush1.msra.mxu0 0.0
    %128 = vmatprep.subr.mxu0 0.0
    %129 = vmatpush1.msra.mxu0 0.0
    %130 = vmatprep.subr.mxu0 0.0
    %131 = vmatpush1.msra.mxu0 0.0
    %132 = vmatprep.subr.mxu0 0.0
    %133 = vmatpush1.msra.mxu0 0.0
    %134 = vmatprep.subr.mxu0 0.0
    %135 = vmatpush1.msra.mxu0 0.0
    %136 = vmatprep.subr.mxu0 0.0
    %137 = vmatpush1.msra.mxu0 0.0
    %138 = vmatprep.subr.mxu0 0.0
    %139 = vmatpush1.msra.mxu0 0.0
    %140 = vmatprep.subr.mxu0 0.0
    %141 = vmatpush1.msra.mxu0 0.0
    %142 = vmatprep.subr.mxu0 0.0
    %143 = vmatpush1.msra.mxu0 0.0
    %144 = vmatprep.subr.mxu0 0.0
    %145 = vmatpush1.msra.mxu0 0.0
    %146 = vmatprep.subr.mxu0 0.0
    %147 = vmatpush1.msra.mxu0 0.0
    %148 = vmatprep.subr.mxu0 0.0
    %149 = vmatpush1.msra.mxu0 0.0
    %150 = vmatprep.mubr.f32.mxu0 0.0
    %151 = vmatmul.mubr.f32.gmra.mrb[0].mxu0 %v84
    %v152 = vpop.f32.mrb[0].mxu0
    %v153 = vadd.f32 %v81, %v152
    %v154 = vpop.f32.mrb[0].mxu0
    %155 = vdwg.mxu0
    %v156 = vtanh.pop %v153
    %v157 = vmax.f32 %v153, 0.0
    %v158 = vsel %vm15, %v156, %v157
    %v159 = vld [vmem:[%s1 + $0x58] sm:$0xff]
    %v160 = vld [vmem:[%s1 + $0x60] sm:$0xff]
    %v161 = vld [vmem:[%s1 + $0x68] sm:$0xff]
    %v162 = vld [vmem:[%s1 + $0x70] sm:$0xff]
    %v163 = vld [vmem:[%s1 + $0x78] sm:$0xff]
    %v164 = vld [vmem:[%s1 + $0x80] sm:$0xff]
    %v165 = vld [vmem:[%s1 + $0x88] sm:$0xff]
    %v166 = vld [vmem:[%s1 + $0x90] sm:$0xff]
    %v167 = vld [vmem:[%s1 + $0x98] sm:$0x1]
    %v168 = vlaneseq
    %v169 = vshrl.u32 %v168, 7
    %v170 = vsub.s32 0, %v169
    %v171 = vrot.slane %v167, %v170
    %v173 = vsel %vm82, %v158, 0
    %175 = vmatprep.subr.mxu0 0.0
    %176 = vmatpush1.msra.mxu0 %v159
    %177 = vmatprep.subr.mxu0 0.0
    %178 = vmatpush1.msra.mxu0 %v160
    %179 = vmatprep.subr.mxu0 0.0
    %180 = vmatpush1.msra.mxu0 %v161
    %181 = vmatprep.subr.mxu0 0.0
    %182 = vmatpush1.msra.mxu0 %v162
    %183 = vmatprep.subr.mxu0 0.0
    %184 = vmatpush1.msra.mxu0 %v163
    %185 = vmatprep.subr.mxu0 0.0
    %186 = vmatpush1.msra.mxu0 %v164
    %187 = vmatprep.subr.mxu0 0.0
    %188 = vmatpush1.msra.mxu0 %v165
    %189 = vmatprep.subr.mxu0 0.0
    %190 = vmatpush1.msra.mxu0 %v166
    %191 = vmatprep.subr.mxu0 0.0
    %192 = vmatpush1.msra.mxu0 0.0
    %193 = vmatprep.subr.mxu0 0.0
    %194 = vmatpush1.msra.mxu0 0.0
    %195 = vmatprep.subr.mxu0 0.0
    %196 = vmatpush1.msra.mxu0 0.0
    %197 = vmatprep.subr.mxu0 0.0
    %198 = vmatpush1.msra.mxu0 0.0
    %199 = vmatprep.subr.mxu0 0.0
    %200 = vmatpush1.msra.mxu0 0.0
    %201 = vmatprep.subr.mxu0 0.0
    %202 = vmatpush1.msra.mxu0 0.0
    %203 = vmatprep.subr.mxu0 0.0
    %204 = vmatpush1.msra.mxu0 0.0
    %205 = vmatprep.subr.mxu0 0.0
    %206 = vmatpush1.msra.mxu0 0.0
    %207 = vmatprep.subr.mxu0 0.0
    %208 = vmatpush1.msra.mxu0 0.0
    %209 = vmatprep.subr.mxu0 0.0
    %210 = vmatpush1.msra.mxu0 0.0
    %211 = vmatprep.subr.mxu0 0.0
    %212 = vmatpush1.msra.mxu0 0.0
    %213 = vmatprep.subr.mxu0 0.0
    %214 = vmatpush1.msra.mxu0 0.0
    %215 = vmatprep.subr.mxu0 0.0
    %216 = vmatpush1.msra.mxu0 0.0
    %217 = vmatprep.subr.mxu0 0.0
    %218 = vmatpush1.msra.mxu0 0.0
    %219 = vmatprep.subr.mxu0 0.0
    %220 = vmatpush1.msra.mxu0 0.0
    %221 = vmatprep.subr.mxu0 0.0
    %222 = vmatpush1.msra.mxu0 0.0
    %223 = vmatprep.subr.mxu0 0.0
    %224 = vmatpush1.msra.mxu0 0.0
    %225 = vmatprep.subr.mxu0 0.0
    %226 = vmatpush1.msra.mxu0 0.0
    %227 = vmatprep.subr.mxu0 0.0
    %228 = vmatpush1.msra.mxu0 0.0
    %229 = vmatprep.subr.mxu0 0.0
    %230 = vmatpush1.msra.mxu0 0.0
    %231 = vmatprep.subr.mxu0 0.0
    %232 = vmatpush1.msra.mxu0 0.0
    %233 = vmatprep.subr.mxu0 0.0
    %234 = vmatpush1.msra.mxu0 0.0
    %235 = vmatprep.subr.mxu0 0.0
    %236 = vmatpush1.msra.mxu0 0.0
    %237 = vmatprep.subr.mxu0 0.0
    %238 = vmatpush1.msra.mxu0 0.0
    %239 = vmatprep.mubr.f32.mxu0 0.0
    %240 = vmatmul.mubr.f32.gmra.mrb[0].mxu0 %v173
    %v241 = vpop.f32.mrb[0].mxu0
    %v242 = vadd.f32 %v171, %v241
    %v243 = vpop.f32.mrb[0].mxu0
    %244 = vdwg.mxu0
    %v245 = vtanh.pop %v242
    %v246 = vmax.f32 %v242, 0.0
    %v247 = vsel %vm15, %v245, %v246
    %v248 = vld [vmem:[%s1 + $0xa0] sm:$0xff]
    %v249 = vld [vmem:[%s1 + $0xa8] sm:$0xff]
    %v250 = vld [vmem:[%s1 + $0xb0] sm:$0xff]
    %v251 = vld [vmem:[%s1 + $0xb8] sm:$0xff]
    %v252 = vld [vmem:[%s1 + $0xc0] sm:$0xff]
    %v253 = vld [vmem:[%s1 + $0xc8] sm:$0xff]
    %v254 = vld [vmem:[%s1 + $0xd0] sm:$0xff]
    %v255 = vld [vmem:[%s1 + $0xd8] sm:$0xff]
    %v256 = vld [vmem:[%s1 + $0xe0] sm:$0x1]
    %v257 = vlaneseq
    %v258 = vshrl.u32 %v257, 7
    %v259 = vsub.s32 0, %v258
    %v260 = vrot.slane %v256, %v259
    %v262 = vsel %vm82, %v247, 0
    %264 = vmatprep.subr.mxu0 0.0
    %265 = vmatpush1.msra.mxu0 %v248
    %266 = vmatprep.subr.mxu0 0.0
    %267 = vmatpush1.msra.mxu0 %v249
    %268 = vmatprep.subr.mxu0 0.0
    %269 = vmatpush1.msra.mxu0 %v250
    %270 = vmatprep.subr.mxu0 0.0
    %271 = vmatpush1.msra.mxu0 %v251
    %272 = vmatprep.subr.mxu0 0.0
    %273 = vmatpush1.msra.mxu0 %v252
    %274 = vmatprep.subr.mxu0 0.0
    %275 = vmatpush1.msra.mxu0 %v253
    %276 = vmatprep.subr.mxu0 0.0
    %277 = vmatpush1.msra.mxu0 %v254
    %278 = vmatprep.subr.mxu0 0.0
    %279 = vmatpush1.msra.mxu0 %v255
    %280 = vmatprep.subr.mxu0 0.0
    %281 = vmatpush1.msra.mxu0 0.0
    %282 = vmatprep.subr.mxu0 0.0
    %283 = vmatpush1.msra.mxu0 0.0
    %284 = vmatprep.subr.mxu0 0.0
    %285 = vmatpush1.msra.mxu0 0.0
    %286 = vmatprep.subr.mxu0 0.0
    %287 = vmatpush1.msra.mxu0 0.0
    %288 = vmatprep.subr.mxu0 0.0
    %289 = vmatpush1.msra.mxu0 0.0
    %290 = vmatprep.subr.mxu0 0.0
    %291 = vmatpush1.msra.mxu0 0.0
    %292 = vmatprep.subr.mxu0 0.0
    %293 = vmatpush1.msra.mxu0 0.0
    %294 = vmatprep.subr.mxu0 0.0
    %295 = vmatpush1.msra.mxu0 0.0
    %296 = vmatprep.subr.mxu0 0.0
    %297 = vmatpush1.msra.mxu0 0.0
    %298 = vmatprep.subr.mxu0 0.0
    %299 = vmatpush1.msra.mxu0 0.0
    %300 = vmatprep.subr.mxu0 0.0
    %301 = vmatpush1.msra.mxu0 0.0
    %302 = vmatprep.subr.mxu0 0.0
    %303 = vmatpush1.msra.mxu0 0.0
    %304 = vmatprep.subr.mxu0 0.0
    %305 = vmatpush1.msra.mxu0 0.0
    %306 = vmatprep.subr.mxu0 0.0
    %307 = vmatpush1.msra.mxu0 0.0
    %308 = vmatprep.subr.mxu0 0.0
    %309 = vmatpush1.msra.mxu0 0.0
    %310 = vmatprep.subr.mxu0 0.0
    %311 = vmatpush1.msra.mxu0 0.0
    %312 = vmatprep.subr.mxu0 0.0
    %313 = vmatpush1.msra.mxu0 0.0
    %314 = vmatprep.subr.mxu0 0.0
    %315 = vmatpush1.msra.mxu0 0.0
    %316 = vmatprep.subr.mxu0 0.0
    %317 = vmatpush1.msra.mxu0 0.0
    %318 = vmatprep.subr.mxu0 0.0
    %319 = vmatpush1.msra.mxu0 0.0
    %320 = vmatprep.subr.mxu0 0.0
    %321 = vmatpush1.msra.mxu0 0.0
    %322 = vmatprep.subr.mxu0 0.0
    %323 = vmatpush1.msra.mxu0 0.0
    %324 = vmatprep.subr.mxu0 0.0
    %325 = vmatpush1.msra.mxu0 0.0
    %326 = vmatprep.subr.mxu0 0.0
    %327 = vmatpush1.msra.mxu0 0.0
    %328 = vmatprep.mubr.f32.mxu0 0.0
    %329 = vmatmul.mubr.f32.gmra.mrb[0].mxu0 %v262
    %v330 = vpop.f32.mrb[0].mxu0
    %v331 = vadd.f32 %v260, %v330
    %v332 = vpop.f32.mrb[0].mxu0
    %333 = vdwg.mxu0
    %v334 = vld [vmem:[%s1 + $0xe8] sm:$0x1]
    %v335 = vlaneseq
    %v336 = vshrl.u32 %v335, 7
    %v337 = vsub.s32 0, %v336
    %v338 = vrot.slane %v334, %v337
    %v339 = vmul.f32 %v331, %v338
    %341 = vrot.lane.b32.xlu0 %v338, 4
    %v342 = vpop.permute.xlu0 %341
    %v344 = vmul.f32 %v331, %v342
    %v345 = vmul.f32 %v344, 1.442695
    %v346 = vpow.pop %v345
    %348 = vrot.lane.b32.xlu0 %v346, 124
    %v349 = vpop.permute.xlu0 %348
    %v351 = vmul.f32 %v12, %v349
    %v352 = vadd.f32 %v351, %v339
    %vm353 = vcmask 31744
    %354 = vst.msk [vmem:[#allocation2] sm:$0xff] %vm353, %v352
    %356 = vrot.lane.b32.xlu0 %v344, 124
    %v357 = vpop.permute.xlu0 %356
    %v359 = vsel %vm353, %v357, 0.0
    %360 = vadd.xlane.f32.xlu0 %v359
    %v361 = vpop.xlane.xlu0 %360
    %vm362 = vcmask 39968
    %363 = vst.msk [vmem:[#allocation2] sm:$0xff] %vm362, %v361
    // Predicated region
    $region10: #{tpu_custom_call.1} parent=1 // pred_check
      _
    $region11: #{tpu_custom_call.1} parent=1 // pred_check_branch
      %365 = sbr.rel (0) target = $region13
    $region12: #{tpu_custom_call.1} parent=1 // pred_region
      %s367 = ssub.s32 128, 128
      %368 = vsyncadd [#allocation3], %s367
      %s370 = sshll.u32 [#allocation2], 4
      %s371 = int_to_ptr.vmem [resolvable:$true] %s370
      %373 = dma.vmem_to_hbm [thread:$0]  %s371, 128, %s2, [#allocation3]
    $region13: #{tpu_custom_call.1} parent=1 // pred_fallthru
      _
    // Predicated region
    $region14: #{tpu_custom_call.1} parent=1 // pred_check
      _
    $region15: #{tpu_custom_call.1} parent=1 // pred_check_branch
      %375 = sbr.rel (0) target = $region17
    $region16: #{tpu_custom_call.1} parent=1 // pred_region
      %376 = dma.done [#allocation3], 128
    $region17: #{tpu_custom_call.1} parent=1 // pred_fallthru
      _
    %377 = vsyncpa [#allocation3], 1

</llo_original>
